<compile_context>
chip_gen: v6e
topology: v6e:2x2x1
jax: 0.10.0
libtpu: 0.0.40
codegen_flags: <defaults>
</compile_context>

<pallas_src>
import functools

import jax
import jax.numpy as jnp
from jax.experimental import pallas as pl
from jax.experimental.pallas import tpu as pltpu


def _round_up(x, m):
    return (x + m - 1) // m * m


def _supcon_kernel(mc_ref, lab_r_ref, lab_c_ref, f_row_ref, f_col_ref, out_ref,
                   e_acc, ms_acc, *, eps, pad_cols, col_resident):
    """One (row_tile, col_tile) step of the streamed SupCon reduction."""
    row_blk = pl.program_id(0)
    col_blk = pl.program_id(1)
    t = f_row_ref.shape[0]

    # ---- init per-row accumulators at the start of every column sweep ------
    @pl.when(col_blk == 0)
    def _init():
        e_acc[...] = jnp.zeros_like(e_acc)
        ms_acc[...] = jnp.zeros_like(ms_acc)

    # Features arrive already L2-normalized, scaled by sqrt(1/tau) and cast to
    # bf16 in the wrapper, so the MXU matmul directly yields sim / tau.
    fr = f_row_ref[...]                                       # (t, d) bf16
    if col_resident:
        c0 = pl.multiple_of(col_blk * t, 128)
        fc = f_col_ref[pl.ds(c0, t), :]                       # slice resident feats
    else:
        fc = f_col_ref[...]                                   # streamed (t, d) tile

    s = jax.lax.dot_general(fr, fc, (((1,), (1,)), ((), ())),
                            preferred_element_type=jnp.float32)   # (t, t) f32

    # Label-equality mask for this tile (bool, includes the diagonal).
    eq = lab_r_ref[...] == lab_c_ref[...]                     # (t,1)==(1,t) -> (t,t)

    def _accumulate(ex, ms):
        e_acc[...] += jnp.sum(ex, axis=1, keepdims=True)
        ms_acc[...] += jnp.sum(ms, axis=1, keepdims=True)

    @pl.when(row_blk == col_blk)
    def _diag_tile():                      # only diagonal tiles pay for "eye"
        rid = jax.lax.broadcasted_iota(jnp.int32, (t, t), 0)
        cid = jax.lax.broadcasted_iota(jnp.int32, (t, t), 1)
        offdiag = rid != cid
        s_m = jnp.where(offdiag, s, 0.0)                      # sim * logits_mask
        _accumulate(jnp.where(offdiag, jnp.exp(s_m), 0.0),
                    jnp.where(eq, s_m, 0.0))

    @pl.when(row_blk != col_blk)
    def _offdiag_tile():
        _accumulate(jnp.exp(s), jnp.where(eq, s, 0.0))

    # ---- finalize: per-row mean log-prob over positives ---------------------
    @pl.when(col_blk == pl.num_programs(1) - 1)
    def _finalize():
        mc = mc_ref[...]                                      # (t,1) positive counts
        denom = e_acc[...]
        if pad_cols:          # zero-padded feature rows contributed exp(0)=1 each
            denom = denom - float(pad_cols)
        out_ref[...] = (ms_acc[...] - mc * jnp.log(denom + eps)) / (mc + eps)


def _positive_counts(labels, n):
    """mc_i = |{ j : labels_j == labels_i }| (includes i itself, = mask.sum(1))."""
    _, inv, counts = jnp.unique(labels, return_inverse=True, return_counts=True,
                                size=n)
    return counts[jnp.reshape(inv, (-1,))].astype(jnp.float32)


def _choose_config(n, d, block):
    """Derive tile size, padded batch, column residency and VMEM limit."""
    try:
        vmem_cap = int(pltpu.get_tpu_info().vmem_capacity_bytes)
    except Exception:
        vmem_cap = 64 * 1024 * 1024        # conservative default (v7x per-core)
    budget = int(vmem_cap * 0.7)

    n128 = _round_up(n, 128)
    # Keep >= 2 row tiles once the batch is big enough so the "parallel" row
    # axis can be split across both v7x TensorCores (no-op on v5e / v6e).
    max_t = n128 if n128 <= 256 else min(n128, _round_up(-(-n128 // 2), 128))
    cap = max(128, min(_round_up(block, 128), max_t))

    def estimate(t, resident):
        n_pad = _round_up(n, t)
        tile_tmp = 6 * t * t * 4                     # (t,t) f32 temporaries
        f_row = 2 * t * d * 2                        # double-buffered bf16 row tile
        f_col = 2 * (n_pad if resident else t) * d * 2
        misc = 8 * t * 4 + 2 * (t + n_pad) * 4       # scratch / labels / counts / out
        return tile_tmp + f_row + f_col + misc

    t = 128
    for cand in range(cap, 127, -128):               # largest tile that fits
        if estimate(cand, False) <= budget:
            t = cand
            break
    n_pad = _round_up(n, t)
    col_resident = estimate(t, True) <= budget
    est = estimate(t, col_resident)
    vmem_limit = max(48 * 1024 * 1024, min(int(vmem_cap * 0.85), 2 * est))
    return t, n_pad, col_resident, int(vmem_limit)


def supcon_loss(feats, labels, temperature=0.07, eps=1e-8, block=1024,
                col_resident=None):
    """Pallas TPU implementation of SupConLoss.forward(feats, labels)."""
    n, d = feats.shape
    t, n_pad, resident_auto, vmem_limit = _choose_config(n, d, block)
    resident = resident_auto if col_resident is None else bool(col_resident)

    # ---- one-time prep, hoisted out of the O((N/t)^2) grid ------------------
    # L2-normalize, fold sqrt(1/tau) into each factor, cast once to bf16.
    f = feats.astype(jnp.float32)
    f = f * jax.lax.rsqrt(jnp.maximum(jnp.sum(f * f, axis=1, keepdims=True),
                                      1e-24))
    f = (f * float((1.0 / temperature) ** 0.5)).astype(jnp.bfloat16)

    labels = labels.astype(jnp.int32).reshape(n)
    mc = _positive_counts(labels, n)

    if n_pad != n:
        f = jnp.zeros((n_pad, d), jnp.bfloat16).at[:n].set(f)
        labels = jnp.zeros((n_pad,), jnp.int32).at[:n].set(labels)
        mc = jnp.zeros((n_pad,), jnp.float32).at[:n].set(mc)

    lab_col = labels.reshape(n_pad, 1)      # row-tile labels (column vector)
    lab_row = labels.reshape(1, n_pad)      # col-tile labels (row vector)
    mc = mc.reshape(n_pad, 1)

    grid = (n_pad // t, n_pad // t)
    kernel = functools.partial(_supcon_kernel, eps=eps, pad_cols=n_pad - n,
                               col_resident=resident)

    if resident:
        # Whole bf16 feature matrix resident in VMEM: fetched once, sliced in-kernel.
        f_col_spec = pl.BlockSpec((n_pad, d), lambda i, j: (0, 0))
        feat_bytes = 2 * n_pad * d * 2
    else:
        f_col_spec = pl.BlockSpec((t, d), lambda i, j: (j, 0))
        feat_bytes = (grid[0] + 1) * n_pad * d * 2   # rows resident per col sweep

    cost = pl.CostEstimate(
        flops=int(2 * n_pad * n_pad * d + 6 * n_pad * n_pad),
        transcendentals=int(n_pad * n_pad + n_pad),
        bytes_accessed=int(feat_bytes + grid[1] * n_pad * 4 + 3 * n_pad * 4),
    )

    out = pl.pallas_call(
        kernel,
        out_shape=jax.ShapeDtypeStruct((n_pad, 1), jnp.float32),
        grid=grid,
        in_specs=[
            pl.BlockSpec((t, 1), lambda i, j: (i, 0)),       # positive counts
            pl.BlockSpec((t, 1), lambda i, j: (i, 0)),       # labels, row tile
            pl.BlockSpec((1, t), lambda i, j: (0, j)),       # labels, col tile
            pl.BlockSpec((t, d), lambda i, j: (i, 0)),       # row feature tile
            f_col_spec,                                       # col features
        ],
        out_specs=pl.BlockSpec((t, 1), lambda i, j: (i, 0)),
        scratch_shapes=[
            pltpu.VMEM((t, 1), jnp.float32),    # running sum_j exp(s)
            pltpu.VMEM((t, 1), jnp.float32),    # running sum_j m * s
        ],
        compiler_params=pltpu.CompilerParams(
            dimension_semantics=("parallel", "arbitrary"),
            vmem_limit_bytes=vmem_limit,
        ),
        cost_estimate=cost,
    )(mc, lab_col, lab_row, f, f)

    # Tiny final reduction in JAX; padded rows are sliced away.
    return -jnp.sum(out[:n, 0]) / n


def _supcon_loss_ref(feats, labels, temperature=0.07, eps=1e-8):
    """Pure-JAX reference matching the PyTorch module exactly (f32 matmul)."""
    f = feats.astype(jnp.float32)
    f = f / jnp.maximum(jnp.sqrt(jnp.sum(f * f, axis=1, keepdims=True)), 1e-12)
    sim = (f @ f.T) / temperature
    mask = (labels.reshape(-1, 1) == labels.reshape(1, -1)).astype(jnp.float32)
    logits_mask = jnp.ones_like(mask) - jnp.eye(mask.shape[0], dtype=jnp.float32)
    sim = sim * logits_mask
    exp = jnp.exp(sim) * logits_mask
    log_prob = sim - jnp.log(exp.sum(1, keepdims=True) + eps)
    mean_log_prob_pos = (mask * log_prob).sum(1) / (mask.sum(1) + eps)
    return -mean_log_prob_pos.mean()


if __name__ == "__main__":
    key = jax.random.PRNGKey(0)
    kf, kl, kf2, kl2 = jax.random.split(key, 4)

    # Small case consistent with the module: batch=8 feature vectors, dim=32.
    N, D = 8, 32
    feats = jax.random.normal(kf, (N, D), dtype=jnp.float32)
    labels = jax.random.randint(kl, (N,), 0, 3)

    loss = supcon_loss(feats, labels)
    jax.block_until_ready(loss)
    ref = _supcon_loss_ref(feats, labels)
    # bf16 MXU operands (f32 accumulation) => slightly looser tolerance.
    assert jnp.allclose(loss, ref, atol=5e-2, rtol=2e-2), (loss, ref)

    # Multi-tile + padding path: N=200 with 128x128 tiles -> 2x2 grid,
    # exercises diagonal/off-diagonal tiles, padded rows/columns and finalize.
    N2, D2 = 200, 32
    feats2 = jax.random.normal(kf2, (N2, D2), dtype=jnp.float32)
    labels2 = jax.random.randint(kl2, (N2,), 0, 4)
    ref2 = _supcon_loss_ref(feats2, labels2)

    loss2 = supcon_loss(feats2, labels2, block=128)                       # resident cols
    jax.block_until_ready(loss2)
    assert jnp.allclose(loss2, ref2, atol=5e-2, rtol=2e-2), (loss2, ref2)

    loss3 = supcon_loss(feats2, labels2, block=128, col_resident=False)   # streamed cols
    jax.block_until_ready(loss3)
    assert jnp.allclose(loss3, ref2, atol=5e-2, rtol=2e-2), (loss3, ref2)

    print("KERNEL_OK")
</pallas_src>

<mosaic_0001>
module attributes {stable_mosaic.version = 11 : i64} {
  func.func @_supcon_kernel(%arg0: i32, %arg1: i32, %arg2: memref<128x1xf32, #tpu.memory_space<vmem>>, %arg3: memref<128x1xi32, #tpu.memory_space<vmem>>, %arg4: memref<1x128xi32, #tpu.memory_space<vmem>>, %arg5: memref<128x32xbf16, #tpu.memory_space<vmem>>, %arg6: memref<128x32xbf16, #tpu.memory_space<vmem>>, %arg7: memref<128x1xf32, #tpu.memory_space<vmem>>, %arg8: memref<128x1xf32, #tpu.memory_space<vmem>>, %arg9: memref<128x1xf32, #tpu.memory_space<vmem>>) attributes {dimension_semantics = [#tpu.dimension_semantics<parallel>, #tpu.dimension_semantics<arbitrary>], iteration_bounds = array<i64: 1, 1>, scalar_prefetch = 0 : i64, scratch_operands = 2 : i64, tpu.core_type = #tpu.core_type<tc>, window_params = [{transform_indices = @transform_0, window_bounds = array<i64: 128, 1>}, {transform_indices = @transform_1, window_bounds = array<i64: 128, 1>}, {transform_indices = @transform_2, window_bounds = array<i64: 1, 128>}, {transform_indices = @transform_3, window_bounds = array<i64: 128, 32>}, {pipeline_mode = #tpu.pipeline_mode<synchronous>, transform_indices = @transform_4, window_bounds = array<i64: 128, 32>}, {transform_indices = @transform_5, window_bounds = array<i64: 128, 1>}]} {
    %c0_i32 = arith.constant 0 : i32
    %0 = arith.cmpi eq, %arg1, %c0_i32 : i32
    %1 = arith.extui %0 : i1 to i32
    %c0_i32_0 = arith.constant 0 : i32
    %2 = arith.cmpi ne, %1, %c0_i32_0 : i32
    scf.if %2 {
      %cst_11 = arith.constant 0.000000e+00 : f32
      %23 = vector.broadcast %cst_11 : f32 to vector<128x1xf32>
      %c0_12 = arith.constant 0 : index
      %c0_13 = arith.constant 0 : index
      %24 = vector.load %arg8[%c0_12, %c0_13] : memref<128x1xf32, #tpu.memory_space<vmem>>, vector<128x1xf32>
      tpu.vector_store %arg8[%c0_12, %c0_13], %23 {strides = array<i32>} : memref<128x1xf32, #tpu.memory_space<vmem>>, vector<128x1xf32>,
      %cst_14 = arith.constant 0.000000e+00 : f32
      %25 = vector.broadcast %cst_14 : f32 to vector<128x1xf32>
      %c0_15 = arith.constant 0 : index
      %c0_16 = arith.constant 0 : index
      %26 = vector.load %arg9[%c0_15, %c0_16] : memref<128x1xf32, #tpu.memory_space<vmem>>, vector<128x1xf32>
      tpu.vector_store %arg9[%c0_15, %c0_16], %25 {strides = array<i32>} : memref<128x1xf32, #tpu.memory_space<vmem>>, vector<128x1xf32>,
    } else {
    }
    %c0 = arith.constant 0 : index
    %c0_1 = arith.constant 0 : index
    %3 = vector.load %arg5[%c0, %c0_1] : memref<128x32xbf16, #tpu.memory_space<vmem>>, vector<128x32xbf16>
    %c128_i32 = arith.constant 128 : i32
    %4 = arith.muli %arg1, %c128_i32 : i32
    %5 = tpu.assume_multiple %4, 128 : i32
    %6 = arith.index_cast %5 : i32 to index
    %c0_2 = arith.constant 0 : index
    %7 = vector.load %arg6[%6, %c0_2] : memref<128x32xbf16, #tpu.memory_space<vmem>>, vector<128x32xbf16>
    %cst = arith.constant dense<0.000000e+00> : vector<128x128xf32>
    %8 = tpu.matmul %3, %7, %cst {dimension_numbers = #tpu.dot_dimension_numbers<[1], [1], [0], [0], [0, 0, 1, 0], [], []>} : vector<128x32xbf16>, vector<128x32xbf16>, vector<128x128xf32> -> vector<128x128xf32>
    %c0_3 = arith.constant 0 : index
    %c0_4 = arith.constant 0 : index
    %9 = vector.load %arg3[%c0_3, %c0_4] : memref<128x1xi32, #tpu.memory_space<vmem>>, vector<128x1xi32>
    %c0_5 = arith.constant 0 : index
    %c0_6 = arith.constant 0 : index
    %10 = vector.load %arg4[%c0_5, %c0_6] : memref<1x128xi32, #tpu.memory_space<vmem>>, vector<1x128xi32>
    %11 = vector.broadcast %9 : vector<128x1xi32> to vector<128x128xi32>
    %12 = vector.broadcast %10 : vector<1x128xi32> to vector<128x128xi32>
    %13 = arith.cmpi eq, %11, %12 : vector<128x128xi32>
    %14 = arith.cmpi eq, %arg0, %arg1 : i32
    %15 = arith.extui %14 : i1 to i32
    %c0_i32_7 = arith.constant 0 : i32
    %16 = arith.cmpi ne, %15, %c0_i32_7 : i32
    scf.if %16 {
      %23 = tpu.iota {dimensions = array<i32: 0>} : vector<128x128xi32>
      %24 = tpu.iota {dimensions = array<i32: 1>} : vector<128x128xi32>
      %25 = arith.cmpi ne, %23, %24 : vector<128x128xi32>
      %cst_11 = arith.constant 0.000000e+00 : f32
      %26 = vector.broadcast %cst_11 : f32 to vector<128x128xf32>
      %27 = arith.select %25, %8, %26 : vector<128x128xi1>, vector<128x128xf32>
      %28 = math.exp %27 : vector<128x128xf32>
      %cst_12 = arith.constant 0.000000e+00 : f32
      %29 = vector.broadcast %cst_12 : f32 to vector<128x128xf32>
      %30 = arith.select %25, %28, %29 : vector<128x128xi1>, vector<128x128xf32>
      %cst_13 = arith.constant 0.000000e+00 : f32
      %31 = vector.broadcast %cst_13 : f32 to vector<128x128xf32>
      %32 = arith.select %13, %27, %31 : vector<128x128xi1>, vector<128x128xf32>
      %c0_14 = arith.constant 0 : index
      %c0_15 = arith.constant 0 : index
      %33 = vector.load %arg8[%c0_14, %c0_15] : memref<128x1xf32, #tpu.memory_space<vmem>>, vector<128x1xf32>
      %cst_16 = arith.constant dense<0.000000e+00> : vector<128xf32>
      %34 = vector.multi_reduction <add>, %30, %cst_16 [1] : vector<128x128xf32> to vector<128xf32>
      %35 = vector.shape_cast %34 : vector<128xf32> to vector<128x1xf32>
      %36 = arith.addf %33, %35 : vector<128x1xf32>
      %c0_17 = arith.constant 0 : index
      %c0_18 = arith.constant 0 : index
      %37 = vector.load %arg8[%c0_17, %c0_18] : memref<128x1xf32, #tpu.memory_space<vmem>>, vector<128x1xf32>
      tpu.vector_store %arg8[%c0_17, %c0_18], %36 {strides = array<i32>} : memref<128x1xf32, #tpu.memory_space<vmem>>, vector<128x1xf32>,
      %c0_19 = arith.constant 0 : index
      %c0_20 = arith.constant 0 : index
      %38 = vector.load %arg9[%c0_19, %c0_20] : memref<128x1xf32, #tpu.memory_space<vmem>>, vector<128x1xf32>
      %cst_21 = arith.constant dense<0.000000e+00> : vector<128xf32>
      %39 = vector.multi_reduction <add>, %32, %cst_21 [1] : vector<128x128xf32> to vector<128xf32>
      %40 = vector.shape_cast %39 : vector<128xf32> to vector<128x1xf32>
      %41 = arith.addf %38, %40 : vector<128x1xf32>
      %c0_22 = arith.constant 0 : index
      %c0_23 = arith.constant 0 : index
      %42 = vector.load %arg9[%c0_22, %c0_23] : memref<128x1xf32, #tpu.memory_space<vmem>>, vector<128x1xf32>
      tpu.vector_store %arg9[%c0_22, %c0_23], %41 {strides = array<i32>} : memref<128x1xf32, #tpu.memory_space<vmem>>, vector<128x1xf32>,
    } else {
    }
    %17 = arith.cmpi ne, %arg0, %arg1 : i32
    %18 = arith.extui %17 : i1 to i32
    %c0_i32_8 = arith.constant 0 : i32
    %19 = arith.cmpi ne, %18, %c0_i32_8 : i32
    scf.if %19 {
      %23 = math.exp %8 : vector<128x128xf32>
      %cst_11 = arith.constant 0.000000e+00 : f32
      %24 = vector.broadcast %cst_11 : f32 to vector<128x128xf32>
      %25 = arith.select %13, %8, %24 : vector<128x128xi1>, vector<128x128xf32>
      %c0_12 = arith.constant 0 : index
      %c0_13 = arith.constant 0 : index
      %26 = vector.load %arg8[%c0_12, %c0_13] : memref<128x1xf32, #tpu.memory_space<vmem>>, vector<128x1xf32>
      %cst_14 = arith.constant dense<0.000000e+00> : vector<128xf32>
      %27 = vector.multi_reduction <add>, %23, %cst_14 [1] : vector<128x128xf32> to vector<128xf32>
      %28 = vector.shape_cast %27 : vector<128xf32> to vector<128x1xf32>
      %29 = arith.addf %26, %28 : vector<128x1xf32>
      %c0_15 = arith.constant 0 : index
      %c0_16 = arith.constant 0 : index
      %30 = vector.load %arg8[%c0_15, %c0_16] : memref<128x1xf32, #tpu.memory_space<vmem>>, vector<128x1xf32>
      tpu.vector_store %arg8[%c0_15, %c0_16], %29 {strides = array<i32>} : memref<128x1xf32, #tpu.memory_space<vmem>>, vector<128x1xf32>,
      %c0_17 = arith.constant 0 : index
      %c0_18 = arith.constant 0 : index
      %31 = vector.load %arg9[%c0_17, %c0_18] : memref<128x1xf32, #tpu.memory_space<vmem>>, vector<128x1xf32>
      %cst_19 = arith.constant dense<0.000000e+00> : vector<128xf32>
      %32 = vector.multi_reduction <add>, %25, %cst_19 [1] : vector<128x128xf32> to vector<128xf32>
      %33 = vector.shape_cast %32 : vector<128xf32> to vector<128x1xf32>
      %34 = arith.addf %31, %33 : vector<128x1xf32>
      %c0_20 = arith.constant 0 : index
      %c0_21 = arith.constant 0 : index
      %35 = vector.load %arg9[%c0_20, %c0_21] : memref<128x1xf32, #tpu.memory_space<vmem>>, vector<128x1xf32>
      tpu.vector_store %arg9[%c0_20, %c0_21], %34 {strides = array<i32>} : memref<128x1xf32, #tpu.memory_space<vmem>>, vector<128x1xf32>,
    } else {
    }
    %c0_i32_9 = arith.constant 0 : i32
    %20 = arith.cmpi eq, %arg1, %c0_i32_9 : i32
    %21 = arith.extui %20 : i1 to i32
    %c0_i32_10 = arith.constant 0 : i32
    %22 = arith.cmpi ne, %21, %c0_i32_10 : i32
    scf.if %22 {
      %c0_11 = arith.constant 0 : index
      %c0_12 = arith.constant 0 : index
      %23 = vector.load %arg2[%c0_11, %c0_12] : memref<128x1xf32, #tpu.memory_space<vmem>>, vector<128x1xf32>
      %c0_13 = arith.constant 0 : index
      %c0_14 = arith.constant 0 : index
      %24 = vector.load %arg8[%c0_13, %c0_14] : memref<128x1xf32, #tpu.memory_space<vmem>>, vector<128x1xf32>
      %cst_15 = arith.constant 1.200000e+02 : f32
      %25 = vector.broadcast %cst_15 : f32 to vector<128x1xf32>
      %26 = arith.subf %24, %25 : vector<128x1xf32>
      %c0_16 = arith.constant 0 : index
      %c0_17 = arith.constant 0 : index
      %27 = vector.load %arg9[%c0_16, %c0_17] : memref<128x1xf32, #tpu.memory_space<vmem>>, vector<128x1xf32>
      %cst_18 = arith.constant 9.99999993E-9 : f32
      %28 = vector.broadcast %cst_18 : f32 to vector<128x1xf32>
      %29 = arith.addf %26, %28 : vector<128x1xf32>
      %30 = math.log %29 : vector<128x1xf32>
      %31 = arith.mulf %23, %30 : vector<128x1xf32>
      %32 = arith.subf %27, %31 : vector<128x1xf32>
      %cst_19 = arith.constant 9.99999993E-9 : f32
      %33 = vector.broadcast %cst_19 : f32 to vector<128x1xf32>
      %34 = arith.addf %23, %33 : vector<128x1xf32>
      %35 = arith.divf %32, %34 : vector<128x1xf32>
      %c0_20 = arith.constant 0 : index
      %c0_21 = arith.constant 0 : index
      %36 = vector.load %arg7[%c0_20, %c0_21] : memref<128x1xf32, #tpu.memory_space<vmem>>, vector<128x1xf32>
      tpu.vector_store %arg7[%c0_20, %c0_21], %35 {strides = array<i32>} : memref<128x1xf32, #tpu.memory_space<vmem>>, vector<128x1xf32>,
    } else {
    }
    return
  }
  func.func @transform_0(%arg0: i32, %arg1: i32) -> (i32, i32) {
    %c0_i32 = arith.constant 0 : i32
    %c0_i32_0 = arith.constant 0 : i32
    return %arg0, %c0_i32 : i32, i32
  }
  func.func @transform_1(%arg0: i32, %arg1: i32) -> (i32, i32) {
    %c0_i32 = arith.constant 0 : i32
    %c0_i32_0 = arith.constant 0 : i32
    return %arg0, %c0_i32 : i32, i32
  }
  func.func @transform_2(%arg0: i32, %arg1: i32) -> (i32, i32) {
    %c0_i32 = arith.constant 0 : i32
    %c0_i32_0 = arith.constant 0 : i32
    return %c0_i32, %arg1 : i32, i32
  }
  func.func @transform_3(%arg0: i32, %arg1: i32) -> (i32, i32) {
    %c0_i32 = arith.constant 0 : i32
    %c0_i32_0 = arith.constant 0 : i32
    return %arg0, %c0_i32 : i32, i32
  }
  func.func @transform_4(%arg0: i32, %arg1: i32) -> (i32, i32) {
    %c0_i32 = arith.constant 0 : i32
    %c0_i32_0 = arith.constant 0 : i32
    %c0_i32_1 = arith.constant 0 : i32
    return %c0_i32, %c0_i32_0 : i32, i32
  }
  func.func @transform_5(%arg0: i32, %arg1: i32) -> (i32, i32) {
    %c0_i32 = arith.constant 0 : i32
    %c0_i32_0 = arith.constant 0 : i32
    return %arg0, %c0_i32 : i32, i32
  }
}

</mosaic_0001>

<llo_original>
// kernel: tpu_custom_call.1
$region0: #{tpu_custom_call.1}
  #allocation0 [shape = 'u32[]', space=smem, size = 0x4, offset = 0x4, fixed_abs, tag = 'smem constant byte address 0x4 - core index']
  #allocation1 [shape = 'u32[144,128]{1,0:T(1,128)}', space=vmem, size = 0x12000, scoped, tag = 'internal scratch']
  #allocation2 [shape = 'f32[128,1]{1,0:T(8,128)}', space=vmem, size = 0x10000, scoped, tag = 'scratch operand']
  #allocation3 [shape = 'f32[128,1]{1,0:T(8,128)}', space=vmem, size = 0x10000, scoped, tag = 'scratch operand']
  %s0 = inlined_call_operand.vmem [shape: f32[128,1], index: 0, kind: input, shape index: {}]
  %s1 = inlined_call_operand.vmem [shape: s32[128,1], index: 1, kind: input, shape index: {}]
  %s2 = inlined_call_operand.vmem [shape: s32[1,128], index: 2, kind: input, shape index: {}]
  %s3 = inlined_call_operand.vmem [shape: bf16[128,32], index: 3, kind: input, shape index: {}]
  %s4 = inlined_call_operand.vmem [shape: bf16[128,32], index: 4, kind: input, shape index: {}]
  %s5 = inlined_call_operand.vmem [shape: f32[128,1], index: 5, kind: output, shape index: {}]
  %s6 = sld [smem:[#allocation0]]
  $region46: #{tpu_custom_call.1} parent=0
    _
  %s8 = ssub.s32 1, %s6
  %s9 = scalar_select 0, %s8, %s6
  // Predicated region
  $region2: #{tpu_custom_call.1} parent=0 // pred_check
    _
  $region3: #{tpu_custom_call.1} parent=0 // pred_check_branch
    %11 = sbr.rel (0) target = $region5
  $region4: #{tpu_custom_call.1} parent=0 // pred_region
    _
  $region5: #{tpu_custom_call.1} parent=0 // pred_fallthru
    _
  // Predicated region
  $region6: #{tpu_custom_call.1} parent=0 // pred_check
    _
  $region7: #{tpu_custom_call.1} parent=0 // pred_check_branch
    %13 = sbr.rel (0) target = $region9
  $region8: #{tpu_custom_call.1} parent=0 // pred_region
    _
  $region9: #{tpu_custom_call.1} parent=0 // pred_fallthru
    _
  // Predicated region
  $region10: #{tpu_custom_call.1} parent=0 // pred_check
    _
  $region11: #{tpu_custom_call.1} parent=0 // pred_check_branch
    %15 = sbr.rel (0) target = $region13
  $region12: #{tpu_custom_call.1} parent=0 // pred_region
    _
  $region13: #{tpu_custom_call.1} parent=0 // pred_fallthru
    _
  // Predicated region
  $region14: #{tpu_custom_call.1} parent=0 // pred_check
    _
  $region15: #{tpu_custom_call.1} parent=0 // pred_check_branch
    %17 = sbr.rel (0) target = $region17
  $region16: #{tpu_custom_call.1} parent=0 // pred_region
    _
  $region17: #{tpu_custom_call.1} parent=0 // pred_fallthru
    _
  // Predicated region
  $region18: #{tpu_custom_call.1} parent=0 // pred_check
    _
  $region19: #{tpu_custom_call.1} parent=0 // pred_check_branch
    %19 = sbr.rel (0) target = $region21
  $region20: #{tpu_custom_call.1} parent=0 // pred_region
    _
  $region21: #{tpu_custom_call.1} parent=0 // pred_fallthru
    _
  %p21 = scmp.eq.s32.totalorder 0, 0
  // Predicated region
  $region22: #{tpu_custom_call.1} parent=0 // pred_check
    %p22 = pneg %p21
  $region23: #{tpu_custom_call.1} parent=0 // pred_check_branch
    %24 = sbr.rel (%p22) target = $region25
  $region24: #{tpu_custom_call.1} parent=0 // pred_region
    %vm25 = vcmask 7168
    %26 = vst.msk [vmem:[#allocation2] sm:$0xff] %vm25, 0.0
    %27 = vst.msk [vmem:[#allocation2 + $0x8] sm:$0xff] %vm25, 0.0
    %28 = vst.msk [vmem:[#allocation2 + $0x10] sm:$0xff] %vm25, 0.0
    %29 = vst.msk [vmem:[#allocation2 + $0x18] sm:$0xff] %vm25, 0.0
    %30 = vst.msk [vmem:[#allocation2 + $0x20] sm:$0xff] %vm25, 0.0
    %31 = vst.msk [vmem:[#allocation2 + $0x28] sm:$0xff] %vm25, 0.0
    %32 = vst.msk [vmem:[#allocation2 + $0x30] sm:$0xff] %vm25, 0.0
    %33 = vst.msk [vmem:[#allocation2 + $0x38] sm:$0xff] %vm25, 0.0
    %34 = vst.msk [vmem:[#allocation2 + $0x40] sm:$0xff] %vm25, 0.0
    %35 = vst.msk [vmem:[#allocation2 + $0x48] sm:$0xff] %vm25, 0.0
    %36 = vst.msk [vmem:[#allocation2 + $0x50] sm:$0xff] %vm25, 0.0
    %37 = vst.msk [vmem:[#allocation2 + $0x58] sm:$0xff] %vm25, 0.0
    %38 = vst.msk [vmem:[#allocation2 + $0x60] sm:$0xff] %vm25, 0.0
    %39 = vst.msk [vmem:[#allocation2 + $0x68] sm:$0xff] %vm25, 0.0
    %40 = vst.msk [vmem:[#allocation2 + $0x70] sm:$0xff] %vm25, 0.0
    %41 = vst.msk [vmem:[#allocation2 + $0x78] sm:$0xff] %vm25, 0.0
    %42 = vst.msk [vmem:[#allocation3] sm:$0xff] %vm25, 0.0
    %43 = vst.msk [vmem:[#allocation3 + $0x8] sm:$0xff] %vm25, 0.0
    %44 = vst.msk [vmem:[#allocation3 + $0x10] sm:$0xff] %vm25, 0.0
    %45 = vst.msk [vmem:[#allocation3 + $0x18] sm:$0xff] %vm25, 0.0
    %46 = vst.msk [vmem:[#allocation3 + $0x20] sm:$0xff] %vm25, 0.0
    %47 = vst.msk [vmem:[#allocation3 + $0x28] sm:$0xff] %vm25, 0.0
    %48 = vst.msk [vmem:[#allocation3 + $0x30] sm:$0xff] %vm25, 0.0
    %49 = vst.msk [vmem:[#allocation3 + $0x38] sm:$0xff] %vm25, 0.0
    %50 = vst.msk [vmem:[#allocation3 + $0x40] sm:$0xff] %vm25, 0.0
    %51 = vst.msk [vmem:[#allocation3 + $0x48] sm:$0xff] %vm25, 0.0
    %52 = vst.msk [vmem:[#allocation3 + $0x50] sm:$0xff] %vm25, 0.0
    %53 = vst.msk [vmem:[#allocation3 + $0x58] sm:$0xff] %vm25, 0.0
    %54 = vst.msk [vmem:[#allocation3 + $0x60] sm:$0xff] %vm25, 0.0
    %55 = vst.msk [vmem:[#allocation3 + $0x68] sm:$0xff] %vm25, 0.0
    %56 = vst.msk [vmem:[#allocation3 + $0x70] sm:$0xff] %vm25, 0.0
    %57 = vst.msk [vmem:[#allocation3 + $0x78] sm:$0xff] %vm25, 0.0
  $region25: #{tpu_custom_call.1} parent=0 // pred_fallthru
    _
  %v58 = vld [vmem:[%s3] sm:$0xf]
  %v59 = vld [vmem:[%s3 + $0x4] sm:$0xf]
  %v60 = vld [vmem:[%s3 + $0x8] sm:$0xf]
  %v61 = vld [vmem:[%s3 + $0xc] sm:$0xf]
  %v62 = vld [vmem:[%s3 + $0x10] sm:$0xf]
  %v63 = vld [vmem:[%s3 + $0x14] sm:$0xf]
  %v64 = vld [vmem:[%s3 + $0x18] sm:$0xf]
  %v65 = vld [vmem:[%s3 + $0x1c] sm:$0xf]
  %v66 = vld [vmem:[%s3 + $0x20] sm:$0xf]
  %v67 = vld [vmem:[%s3 + $0x24] sm:$0xf]
  %v68 = vld [vmem:[%s3 + $0x28] sm:$0xf]
  %v69 = vld [vmem:[%s3 + $0x2c] sm:$0xf]
  %v70 = vld [vmem:[%s3 + $0x30] sm:$0xf]
  %v71 = vld [vmem:[%s3 + $0x34] sm:$0xf]
  %v72 = vld [vmem:[%s3 + $0x38] sm:$0xf]
  %v73 = vld [vmem:[%s3 + $0x3c] sm:$0xf]
  %s74 = smul.u32 0, 128
  %s75 = sshra.s32 %s74, 3
  %s76 = sand.u32 %s74, 7
  %s77 = smul.addr %s75, 4
  %s78 = scalar_lea.vmem %s4, %s77
  %v79 = vld [vmem:[%s78] sm:$0xf]
  %v80 = vld [vmem:[%s78 + $0x4] sm:$0xf]
  %v81 = vld [vmem:[%s78 + $0x8] sm:$0xf]
  %v82 = vld [vmem:[%s78 + $0xc] sm:$0xf]
  %v83 = vld [vmem:[%s78 + $0x10] sm:$0xf]
  %v84 = vld [vmem:[%s78 + $0x14] sm:$0xf]
  %v85 = vld [vmem:[%s78 + $0x18] sm:$0xf]
  %v86 = vld [vmem:[%s78 + $0x1c] sm:$0xf]
  %v87 = vld [vmem:[%s78 + $0x20] sm:$0xf]
  %v88 = vld [vmem:[%s78 + $0x24] sm:$0xf]
  %v89 = vld [vmem:[%s78 + $0x28] sm:$0xf]
  %v90 = vld [vmem:[%s78 + $0x2c] sm:$0xf]
  %v91 = vld [vmem:[%s78 + $0x30] sm:$0xf]
  %v92 = vld [vmem:[%s78 + $0x34] sm:$0xf]
  %v93 = vld [vmem:[%s78 + $0x38] sm:$0xf]
  %v94 = vld [vmem:[%s78 + $0x3c] sm:$0xf]
  %v111 = vunpack.c.l.b16 %v58
  %v112 = vunpack.c.l.b16 %v59
  %v113 = vunpack.c.l.b16 %v60
  %v114 = vunpack.c.l.b16 %v61
  %v115 = vunpack.c.l.b16 %v62
  %v116 = vunpack.c.l.b16 %v63
  %v117 = vunpack.c.l.b16 %v64
  %v118 = vunpack.c.l.b16 %v65
  %v119 = vunpack.c.l.b16 %v66
  %v120 = vunpack.c.l.b16 %v67
  %v121 = vunpack.c.l.b16 %v68
  %v122 = vunpack.c.l.b16 %v69
  %v123 = vunpack.c.l.b16 %v70
  %v124 = vunpack.c.l.b16 %v71
  %v125 = vunpack.c.l.b16 %v72
  %v126 = vunpack.c.l.b16 %v73
  %v127 = vpack.c.b16 %v112, %v111
  %v128 = vpack.c.b16 %v114, %v113
  %v129 = vpack.c.b16 %v116, %v115
  %v130 = vpack.c.b16 %v118, %v117
  %v131 = vpack.c.b16 %v120, %v119
  %v132 = vpack.c.b16 %v122, %v121
  %v133 = vpack.c.b16 %v124, %v123
  %v134 = vpack.c.b16 %v126, %v125
  %v151 = vunpack.c.l.b16 %v79
  %v152 = vunpack.c.l.b16 %v80
  %v153 = vunpack.c.l.b16 %v81
  %v154 = vunpack.c.l.b16 %v82
  %v155 = vunpack.c.l.b16 %v83
  %v156 = vunpack.c.l.b16 %v84
  %v157 = vunpack.c.l.b16 %v85
  %v158 = vunpack.c.l.b16 %v86
  %v159 = vunpack.c.l.b16 %v87
  %v160 = vunpack.c.l.b16 %v88
  %v161 = vunpack.c.l.b16 %v89
  %v162 = vunpack.c.l.b16 %v90
  %v163 = vunpack.c.l.b16 %v91
  %v164 = vunpack.c.l.b16 %v92
  %v165 = vunpack.c.l.b16 %v93
  %v166 = vunpack.c.l.b16 %v94
  %v167 = vpack.c.b16 %v152, %v151
  %v168 = vpack.c.b16 %v154, %v153
  %v169 = vpack.c.b16 %v156, %v155
  %v170 = vpack.c.b16 %v158, %v157
  %v171 = vpack.c.b16 %v160, %v159
  %v172 = vpack.c.b16 %v162, %v161
  %v173 = vpack.c.b16 %v164, %v163
  %v174 = vpack.c.b16 %v166, %v165
  %vm175 = vcmask 261120
  %v177 = vsel %vm175, %v127, 0
  %v180 = vsel %vm175, %v128, 0
  %v183 = vsel %vm175, %v129, 0
  %v186 = vsel %vm175, %v130, 0
  %v189 = vsel %vm175, %v131, 0
  %v192 = vsel %vm175, %v132, 0
  %v195 = vsel %vm175, %v133, 0
  %v198 = vsel %vm175, %v134, 0
  %v201 = vsel %vm175, %v167, 0
  %v204 = vsel %vm175, %v168, 0
  %v207 = vsel %vm175, %v169, 0
  %v210 = vsel %vm175, %v170, 0
  %v213 = vsel %vm175, %v171, 0
  %v216 = vsel %vm175, %v172, 0
  %v219 = vsel %vm175, %v173, 0
  %v222 = vsel %vm175, %v174, 0
  %224 = vmatprep.subr.bf16.mxu0 0
  %225 = vmatpush1.bf16.xpose.msra.mxu0 %v222
  %226 = vmatprep.subr.bf16.mxu0 0
  %227 = vmatpush1.bf16.xpose.msra.mxu0 %v219
  %228 = vmatprep.subr.bf16.mxu0 0
  %229 = vmatpush1.bf16.xpose.msra.mxu0 %v216
  %230 = vmatprep.subr.bf16.mxu0 0
  %231 = vmatpush1.bf16.xpose.msra.mxu0 %v213
  %232 = vmatprep.subr.bf16.mxu0 0
  %233 = vmatpush1.bf16.xpose.msra.mxu0 %v210
  %234 = vmatprep.subr.bf16.mxu0 0
  %235 = vmatpush1.bf16.xpose.msra.mxu0 %v207
  %236 = vmatprep.subr.bf16.mxu0 0
  %237 = vmatpush1.bf16.xpose.msra.mxu0 %v204
  %238 = vmatprep.subr.bf16.mxu0 0
  %239 = vmatpush1.bf16.xpose.msra.mxu0 %v201
  %240 = vmatprep.subr.bf16.mxu0 0
  %241 = vmatpush2.bf16.xpose.msra.mxu0 0
  %242 = vmatprep.subr.bf16.mxu0 0
  %243 = vmatpush2.bf16.xpose.msra.mxu0 0
  %244 = vmatprep.subr.bf16.mxu0 0
  %245 = vmatpush2.bf16.xpose.msra.mxu0 0
  %246 = vmatprep.subr.bf16.mxu0 0
  %247 = vmatpush2.bf16.xpose.msra.mxu0 0
  %248 = vmatprep.subr.bf16.mxu0 0
  %249 = vmatpush2.bf16.xpose.msra.mxu0 0
  %250 = vmatprep.subr.bf16.mxu0 0
  %251 = vmatpush2.bf16.xpose.msra.mxu0 0
  %252 = vmatprep.subr.bf16.mxu0 0
  %253 = vmatpush2.bf16.xpose.msra.mxu0 0
  %254 = vmatprep.subr.bf16.mxu0 0
  %255 = vmatpush2.bf16.xpose.msra.mxu0 0
  %256 = vmatprep.mubr.bf16.mxu0 0
  %257 = vmatmul.mubr.bf16.gmra.mxu0 %v177
  %v258 = vpop.f32.mrf.mxu0
  %v259 = vadd.f32 0.0, %v258
  %v260 = vpop.f32.mrf.mxu0
  %v261 = vpop.f32.mrf.mxu0
  %v262 = vadd.f32 0.0, %v261
  %v263 = vpop.f32.mrf.mxu0
  %264 = vmatprep.mubr.bf16.mxu0 0
  %265 = vmatmul.mubr.bf16.gmra.mxu0 %v180
  %v266 = vpop.f32.mrf.mxu0
  %v267 = vadd.f32 0.0, %v266
  %v268 = vpop.f32.mrf.mxu0
  %v269 = vpop.f32.mrf.mxu0
  %v270 = vadd.f32 0.0, %v269
  %v271 = vpop.f32.mrf.mxu0
  %272 = vmatprep.mubr.bf16.mxu0 0
  %273 = vmatmul.mubr.bf16.gmra.mxu0 %v183
  %v274 = vpop.f32.mrf.mxu0
  %v275 = vadd.f32 0.0, %v274
  %v276 = vpop.f32.mrf.mxu0
  %v277 = vpop.f32.mrf.mxu0
  %v278 = vadd.f32 0.0, %v277
  %v279 = vpop.f32.mrf.mxu0
  %280 = vmatprep.mubr.bf16.mxu0 0
  %281 = vmatmul.mubr.bf16.gmra.mxu0 %v186
  %v282 = vpop.f32.mrf.mxu0
  %v283 = vadd.f32 0.0, %v282
  %v284 = vpop.f32.mrf.mxu0
  %v285 = vpop.f32.mrf.mxu0
  %v286 = vadd.f32 0.0, %v285
  %v287 = vpop.f32.mrf.mxu0
  %288 = vmatprep.mubr.bf16.mxu0 0
  %289 = vmatmul.mubr.bf16.gmra.mxu0 %v189
  %v290 = vpop.f32.mrf.mxu0
  %v291 = vadd.f32 0.0, %v290
  %v292 = vpop.f32.mrf.mxu0
  %v293 = vpop.f32.mrf.mxu0
  %v294 = vadd.f32 0.0, %v293
  %v295 = vpop.f32.mrf.mxu0
  %296 = vmatprep.mubr.bf16.mxu0 0
  %297 = vmatmul.mubr.bf16.gmra.mxu0 %v192
  %v298 = vpop.f32.mrf.mxu0
  %v299 = vadd.f32 0.0, %v298
  %v300 = vpop.f32.mrf.mxu0
  %v301 = vpop.f32.mrf.mxu0
  %v302 = vadd.f32 0.0, %v301
  %v303 = vpop.f32.mrf.mxu0
  %304 = vmatprep.mubr.bf16.mxu0 0
  %305 = vmatmul.mubr.bf16.gmra.mxu0 %v195
  %v306 = vpop.f32.mrf.mxu0
  %v307 = vadd.f32 0.0, %v306
  %v308 = vpop.f32.mrf.mxu0
  %v309 = vpop.f32.mrf.mxu0
  %v310 = vadd.f32 0.0, %v309
  %v311 = vpop.f32.mrf.mxu0
  %312 = vmatprep.mubr.bf16.mxu0 0
  %313 = vmatmul.mubr.bf16.gmra.mxu0 %v198
  %v314 = vpop.f32.mrf.mxu0
  %v315 = vadd.f32 0.0, %v314
  %v316 = vpop.f32.mrf.mxu0
  %v317 = vpop.f32.mrf.mxu0
  %v318 = vadd.f32 0.0, %v317
  %v319 = vpop.f32.mrf.mxu0
  %320 = vdwg.mxu0
  %v321 = vld [vmem:[%s1] sm:$0xff]
  %v322 = vld [vmem:[%s1 + $0x8] sm:$0xff]
  %v323 = vld [vmem:[%s1 + $0x10] sm:$0xff]
  %v324 = vld [vmem:[%s1 + $0x18] sm:$0xff]
  %v325 = vld [vmem:[%s1 + $0x20] sm:$0xff]
  %v326 = vld [vmem:[%s1 + $0x28] sm:$0xff]
  %v327 = vld [vmem:[%s1 + $0x30] sm:$0xff]
  %v328 = vld [vmem:[%s1 + $0x38] sm:$0xff]
  %v329 = vld [vmem:[%s1 + $0x40] sm:$0xff]
  %v330 = vld [vmem:[%s1 + $0x48] sm:$0xff]
  %v331 = vld [vmem:[%s1 + $0x50] sm:$0xff]
  %v332 = vld [vmem:[%s1 + $0x58] sm:$0xff]
  %v333 = vld [vmem:[%s1 + $0x60] sm:$0xff]
  %v334 = vld [vmem:[%s1 + $0x68] sm:$0xff]
  %v335 = vld [vmem:[%s1 + $0x70] sm:$0xff]
  %v336 = vld [vmem:[%s1 + $0x78] sm:$0xff]
  %v337 = vld [vmem:[%s2] sm:$0x1]
  %338 = vset.pattern.permute.xlu0 0
  %339 = vperm.xlu0 %338, %v321
  %v340 = vpop.permute.xlu0 %339
  %341 = vset.pattern.permute.xlu0 0
  %342 = vperm.xlu0 %341, %v322
  %v343 = vpop.permute.xlu0 %342
  %344 = vset.pattern.permute.xlu0 0
  %345 = vperm.xlu0 %344, %v323
  %v346 = vpop.permute.xlu0 %345
  %347 = vset.pattern.permute.xlu0 0
  %348 = vperm.xlu0 %347, %v324
  %v349 = vpop.permute.xlu0 %348
  %350 = vset.pattern.permute.xlu0 0
  %351 = vperm.xlu0 %350, %v325
  %v352 = vpop.permute.xlu0 %351
  %353 = vset.pattern.permute.xlu0 0
  %354 = vperm.xlu0 %353, %v326
  %v355 = vpop.permute.xlu0 %354
  %356 = vset.pattern.permute.xlu0 0
  %357 = vperm.xlu0 %356, %v327
  %v358 = vpop.permute.xlu0 %357
  %359 = vset.pattern.permute.xlu0 0
  %360 = vperm.xlu0 %359, %v328
  %v361 = vpop.permute.xlu0 %360
  %362 = vset.pattern.permute.xlu0 0
  %363 = vperm.xlu0 %362, %v329
  %v364 = vpop.permute.xlu0 %363
  %365 = vset.pattern.permute.xlu0 0
  %366 = vperm.xlu0 %365, %v330
  %v367 = vpop.permute.xlu0 %366
  %368 = vset.pattern.permute.xlu0 0
  %369 = vperm.xlu0 %368, %v331
  %v370 = vpop.permute.xlu0 %369
  %371 = vset.pattern.permute.xlu0 0
  %372 = vperm.xlu0 %371, %v332
  %v373 = vpop.permute.xlu0 %372
  %374 = vset.pattern.permute.xlu0 0
  %375 = vperm.xlu0 %374, %v333
  %v376 = vpop.permute.xlu0 %375
  %377 = vset.pattern.permute.xlu0 0
  %378 = vperm.xlu0 %377, %v334
  %v379 = vpop.permute.xlu0 %378
  %380 = vset.pattern.permute.xlu0 0
  %381 = vperm.xlu0 %380, %v335
  %v382 = vpop.permute.xlu0 %381
  %383 = vset.pattern.permute.xlu0 0
  %384 = vperm.xlu0 %383, %v336
  %v385 = vpop.permute.xlu0 %384
  %v386 = vlaneseq
  %v387 = vshrl.u32 %v386, 7
  %v388 = vsub.s32 0, %v387
  %v389 = vrot.slane %v337, %v388
  %vm390 = vcmp.eq.s32.totalorder %v340, %v389
  %vm391 = vcmp.eq.s32.totalorder %v343, %v389
  %vm392 = vcmp.eq.s32.totalorder %v346, %v389
  %vm393 = vcmp.eq.s32.totalorder %v349, %v389
  %vm394 = vcmp.eq.s32.totalorder %v352, %v389
  %vm395 = vcmp.eq.s32.totalorder %v355, %v389
  %vm396 = vcmp.eq.s32.totalorder %v358, %v389
  %vm397 = vcmp.eq.s32.totalorder %v361, %v389
  %vm398 = vcmp.eq.s32.totalorder %v364, %v389
  %vm399 = vcmp.eq.s32.totalorder %v367, %v389
  %vm400 = vcmp.eq.s32.totalorder %v370, %v389
  %vm401 = vcmp.eq.s32.totalorder %v373, %v389
  %vm402 = vcmp.eq.s32.totalorder %v376, %v389
  %vm403 = vcmp.eq.s32.totalorder %v379, %v389
  %vm404 = vcmp.eq.s32.totalorder %v382, %v389
  %vm405 = vcmp.eq.s32.totalorder %v385, %v389
  %p406 = scmp.eq.s32.totalorder 0, 0
  // Predicated region
  $region26: #{tpu_custom_call.1} parent=0 // pred_check
    %p407 = pneg %p406
  $region27: #{tpu_custom_call.1} parent=0 // pred_check_branch
    %409 = sbr.rel (%p407) target = $region29
  $region28: #{tpu_custom_call.1} parent=0 // pred_region
    %v410 = vlaneseq
    %v411 = vshrl.u32 %v410, 7
    %v412 = vadd.s32 %v411, 8
    %v413 = vadd.s32 %v411, 16
    %v414 = vadd.s32 %v411, 24
    %v415 = vadd.s32 %v411, 32
    %v416 = vadd.s32 %v411, 40
    %v417 = vadd.s32 %v411, 48
    %v418 = vadd.s32 %v411, 56
    %v419 = vadd.s32 %v411, 64
    %v420 = vadd.s32 %v411, 72
    %v421 = vadd.s32 %v411, 80
    %v422 = vadd.s32 %v411, 88
    %v423 = vadd.s32 %v411, 96
    %v424 = vadd.s32 %v411, 104
    %v425 = vadd.s32 %v411, 112
    %v426 = vadd.s32 %v411, 120
    %v427 = vlaneseq
    %v428 = vand.u32 %v427, 127
    %vm429 = vcmp.ne.s32.totalorder %v411, %v428
    %vm430 = vcmp.ne.s32.totalorder %v412, %v428
    %vm431 = vcmp.ne.s32.totalorder %v413, %v428
    %vm432 = vcmp.ne.s32.totalorder %v414, %v428
    %vm433 = vcmp.ne.s32.totalorder %v415, %v428
    %vm434 = vcmp.ne.s32.totalorder %v416, %v428
    %vm435 = vcmp.ne.s32.totalorder %v417, %v428
    %vm436 = vcmp.ne.s32.totalorder %v418, %v428
    %vm437 = vcmp.ne.s32.totalorder %v419, %v428
    %vm438 = vcmp.ne.s32.totalorder %v420, %v428
    %vm439 = vcmp.ne.s32.totalorder %v421, %v428
    %vm440 = vcmp.ne.s32.totalorder %v422, %v428
    %vm441 = vcmp.ne.s32.totalorder %v423, %v428
    %vm442 = vcmp.ne.s32.totalorder %v424, %v428
    %vm443 = vcmp.ne.s32.totalorder %v425, %v428
    %vm444 = vcmp.ne.s32.totalorder %v426, %v428
    %v445 = vsel %vm429, %v259, 0.0
    %v446 = vsel %vm430, %v262, 0.0
    %v447 = vsel %vm431, %v267, 0.0
    %v448 = vsel %vm432, %v270, 0.0
    %v449 = vsel %vm433, %v275, 0.0
    %v450 = vsel %vm434, %v278, 0.0
    %v451 = vsel %vm435, %v283, 0.0
    %v452 = vsel %vm436, %v286, 0.0
    %v453 = vsel %vm437, %v291, 0.0
    %v454 = vsel %vm438, %v294, 0.0
    %v455 = vsel %vm439, %v299, 0.0
    %v456 = vsel %vm440, %v302, 0.0
    %v457 = vsel %vm441, %v307, 0.0
    %v458 = vsel %vm442, %v310, 0.0
    %v459 = vsel %vm443, %v315, 0.0
    %v460 = vsel %vm444, %v318, 0.0
    %v461 = vmul.f32 %v445, 1.442695
    %v462 = vpow.pop %v461
    %v463 = vmul.f32 %v446, 1.442695
    %v464 = vpow.pop %v463
    %v465 = vmul.f32 %v447, 1.442695
    %v466 = vpow.pop %v465
    %v467 = vmul.f32 %v448, 1.442695
    %v468 = vpow.pop %v467
    %v469 = vmul.f32 %v449, 1.442695
    %v470 = vpow.pop %v469
    %v471 = vmul.f32 %v450, 1.442695
    %v472 = vpow.pop %v471
    %v473 = vmul.f32 %v451, 1.442695
    %v474 = vpow.pop %v473
    %v475 = vmul.f32 %v452, 1.442695
    %v476 = vpow.pop %v475
    %v477 = vmul.f32 %v453, 1.442695
    %v478 = vpow.pop %v477
    %v479 = vmul.f32 %v454, 1.442695
    %v480 = vpow.pop %v479
    %v481 = vmul.f32 %v455, 1.442695
    %v482 = vpow.pop %v481
    %v483 = vmul.f32 %v456, 1.442695
    %v484 = vpow.pop %v483
    %v485 = vmul.f32 %v457, 1.442695
    %v486 = vpow.pop %v485
    %v487 = vmul.f32 %v458, 1.442695
    %v488 = vpow.pop %v487
    %v489 = vmul.f32 %v459, 1.442695
    %v490 = vpow.pop %v489
    %v491 = vmul.f32 %v460, 1.442695
    %v492 = vpow.pop %v491
    %v493 = vsel %vm429, %v462, 0.0
    %v494 = vsel %vm430, %v464, 0.0
    %v495 = vsel %vm431, %v466, 0.0
    %v496 = vsel %vm432, %v468, 0.0
    %v497 = vsel %vm433, %v470, 0.0
    %v498 = vsel %vm434, %v472, 0.0
    %v499 = vsel %vm435, %v474, 0.0
    %v500 = vsel %vm436, %v476, 0.0
    %v501 = vsel %vm437, %v478, 0.0
    %v502 = vsel %vm438, %v480, 0.0
    %v503 = vsel %vm439, %v482, 0.0
    %v504 = vsel %vm440, %v484, 0.0
    %v505 = vsel %vm441, %v486, 0.0
    %v506 = vsel %vm442, %v488, 0.0
    %v507 = vsel %vm443, %v490, 0.0
    %v508 = vsel %vm444, %v492, 0.0
    %v509 = vsel %vm390, %v445, 0.0
    %v510 = vsel %vm391, %v446, 0.0
    %v511 = vsel %vm392, %v447, 0.0
    %v512 = vsel %vm393, %v448, 0.0
    %v513 = vsel %vm394, %v449, 0.0
    %v514 = vsel %vm395, %v450, 0.0
    %v515 = vsel %vm396, %v451, 0.0
    %v516 = vsel %vm397, %v452, 0.0
    %v517 = vsel %vm398, %v453, 0.0
    %v518 = vsel %vm399, %v454, 0.0
    %v519 = vsel %vm400, %v455, 0.0
    %v520 = vsel %vm401, %v456, 0.0
    %v521 = vsel %vm402, %v457, 0.0
    %v522 = vsel %vm403, %v458, 0.0
    %v523 = vsel %vm404, %v459, 0.0
    %v524 = vsel %vm405, %v460, 0.0
    %v525 = vld [vmem:[#allocation2] sm:$0xff]
    %v526 = vld [vmem:[#allocation2 + $0x8] sm:$0xff]
    %v527 = vld [vmem:[#allocation2 + $0x10] sm:$0xff]
    %v528 = vld [vmem:[#allocation2 + $0x18] sm:$0xff]
    %v529 = vld [vmem:[#allocation2 + $0x20] sm:$0xff]
    %v530 = vld [vmem:[#allocation2 + $0x28] sm:$0xff]
    %v531 = vld [vmem:[#allocation2 + $0x30] sm:$0xff]
    %v532 = vld [vmem:[#allocation2 + $0x38] sm:$0xff]
    %v533 = vld [vmem:[#allocation2 + $0x40] sm:$0xff]
    %v534 = vld [vmem:[#allocation2 + $0x48] sm:$0xff]
    %v535 = vld [vmem:[#allocation2 + $0x50] sm:$0xff]
    %v536 = vld [vmem:[#allocation2 + $0x58] sm:$0xff]
    %v537 = vld [vmem:[#allocation2 + $0x60] sm:$0xff]
    %v538 = vld [vmem:[#allocation2 + $0x68] sm:$0xff]
    %v539 = vld [vmem:[#allocation2 + $0x70] sm:$0xff]
    %v540 = vld [vmem:[#allocation2 + $0x78] sm:$0xff]
    %541 = vadd.xlane.f32.xlu0 %v493
    %v542 = vpop.xlane.xlu0 %541
    %543 = vadd.xlane.f32.xlu0 %v494
    %v544 = vpop.xlane.xlu0 %543
    %545 = vadd.xlane.f32.xlu0 %v495
    %v546 = vpop.xlane.xlu0 %545
    %547 = vadd.xlane.f32.xlu0 %v496
    %v548 = vpop.xlane.xlu0 %547
    %549 = vadd.xlane.f32.xlu0 %v497
    %v550 = vpop.xlane.xlu0 %549
    %551 = vadd.xlane.f32.xlu0 %v498
    %v552 = vpop.xlane.xlu0 %551
    %553 = vadd.xlane.f32.xlu0 %v499
    %v554 = vpop.xlane.xlu0 %553
    %555 = vadd.xlane.f32.xlu0 %v500
    %v556 = vpop.xlane.xlu0 %555
    %557 = vadd.xlane.f32.xlu0 %v501
    %v558 = vpop.xlane.xlu0 %557
    %559 = vadd.xlane.f32.xlu0 %v502
    %v560 = vpop.xlane.xlu0 %559
    %561 = vadd.xlane.f32.xlu0 %v503
    %v562 = vpop.xlane.xlu0 %561
    %563 = vadd.xlane.f32.xlu0 %v504
    %v564 = vpop.xlane.xlu0 %563
    %565 = vadd.xlane.f32.xlu0 %v505
    %v566 = vpop.xlane.xlu0 %565
    %567 = vadd.xlane.f32.xlu0 %v506
    %v568 = vpop.xlane.xlu0 %567
    %569 = vadd.xlane.f32.xlu0 %v507
    %v570 = vpop.xlane.xlu0 %569
    %571 = vadd.xlane.f32.xlu0 %v508
    %v572 = vpop.xlane.xlu0 %571
    %v573 = vadd.f32 %v525, %v542
    %v574 = vadd.f32 %v526, %v544
    %v575 = vadd.f32 %v527, %v546
    %v576 = vadd.f32 %v528, %v548
    %v577 = vadd.f32 %v529, %v550
    %v578 = vadd.f32 %v530, %v552
    %v579 = vadd.f32 %v531, %v554
    %v580 = vadd.f32 %v532, %v556
    %v581 = vadd.f32 %v533, %v558
    %v582 = vadd.f32 %v534, %v560
    %v583 = vadd.f32 %v535, %v562
    %v584 = vadd.f32 %v536, %v564
    %v585 = vadd.f32 %v537, %v566
    %v586 = vadd.f32 %v538, %v568
    %v587 = vadd.f32 %v539, %v570
    %v588 = vadd.f32 %v540, %v572
    %vm589 = vcmask 7168
    %590 = vst.msk [vmem:[#allocation2] sm:$0xff] %vm589, %v573
    %591 = vst.msk [vmem:[#allocation2 + $0x8] sm:$0xff] %vm589, %v574
    %592 = vst.msk [vmem:[#allocation2 + $0x10] sm:$0xff] %vm589, %v575
    %593 = vst.msk [vmem:[#allocation2 + $0x18] sm:$0xff] %vm589, %v576
    %594 = vst.msk [vmem:[#allocation2 + $0x20] sm:$0xff] %vm589, %v577
    %595 = vst.msk [vmem:[#allocation2 + $0x28] sm:$0xff] %vm589, %v578
    %596 = vst.msk [vmem:[#allocation2 + $0x30] sm:$0xff] %vm589, %v579
    %597 = vst.msk [vmem:[#allocation2 + $0x38] sm:$0xff] %vm589, %v580
    %598 = vst.msk [vmem:[#allocation2 + $0x40] sm:$0xff] %vm589, %v581
    %599 = vst.msk [vmem:[#allocation2 + $0x48] sm:$0xff] %vm589, %v582
    %600 = vst.msk [vmem:[#allocation2 + $0x50] sm:$0xff] %vm589, %v583
    %601 = vst.msk [vmem:[#allocation2 + $0x58] sm:$0xff] %vm589, %v584
    %602 = vst.msk [vmem:[#allocation2 + $0x60] sm:$0xff] %vm589, %v585
    %603 = vst.msk [vmem:[#allocation2 + $0x68] sm:$0xff] %vm589, %v586
    %604 = vst.msk [vmem:[#allocation2 + $0x70] sm:$0xff] %vm589, %v587
    %605 = vst.msk [vmem:[#allocation2 + $0x78] sm:$0xff] %vm589, %v588
    %v606 = vld [vmem:[#allocation3] sm:$0xff]
    %v607 = vld [vmem:[#allocation3 + $0x8] sm:$0xff]
    %v608 = vld [vmem:[#allocation3 + $0x10] sm:$0xff]
    %v609 = vld [vmem:[#allocation3 + $0x18] sm:$0xff]
    %v610 = vld [vmem:[#allocation3 + $0x20] sm:$0xff]
    %v611 = vld [vmem:[#allocation3 + $0x28] sm:$0xff]
    %v612 = vld [vmem:[#allocation3 + $0x30] sm:$0xff]
    %v613 = vld [vmem:[#allocation3 + $0x38] sm:$0xff]
    %v614 = vld [vmem:[#allocation3 + $0x40] sm:$0xff]
    %v615 = vld [vmem:[#allocation3 + $0x48] sm:$0xff]
    %v616 = vld [vmem:[#allocation3 + $0x50] sm:$0xff]
    %v617 = vld [vmem:[#allocation3 + $0x58] sm:$0xff]
    %v618 = vld [vmem:[#allocation3 + $0x60] sm:$0xff]
    %v619 = vld [vmem:[#allocation3 + $0x68] sm:$0xff]
    %v620 = vld [vmem:[#allocation3 + $0x70] sm:$0xff]
    %v621 = vld [vmem:[#allocation3 + $0x78] sm:$0xff]
    %622 = vadd.xlane.f32.xlu0 %v509
    %v623 = vpop.xlane.xlu0 %622
    %624 = vadd.xlane.f32.xlu0 %v510
    %v625 = vpop.xlane.xlu0 %624
    %626 = vadd.xlane.f32.xlu0 %v511
    %v627 = vpop.xlane.xlu0 %626
    %628 = vadd.xlane.f32.xlu0 %v512
    %v629 = vpop.xlane.xlu0 %628
    %630 = vadd.xlane.f32.xlu0 %v513
    %v631 = vpop.xlane.xlu0 %630
    %632 = vadd.xlane.f32.xlu0 %v514
    %v633 = vpop.xlane.xlu0 %632
    %634 = vadd.xlane.f32.xlu0 %v515
    %v635 = vpop.xlane.xlu0 %634
    %636 = vadd.xlane.f32.xlu0 %v516
    %v637 = vpop.xlane.xlu0 %636
    %638 = vadd.xlane.f32.xlu0 %v517
    %v639 = vpop.xlane.xlu0 %638
    %640 = vadd.xlane.f32.xlu0 %v518
    %v641 = vpop.xlane.xlu0 %640
    %642 = vadd.xlane.f32.xlu0 %v519
    %v643 = vpop.xlane.xlu0 %642
    %644 = vadd.xlane.f32.xlu0 %v520
    %v645 = vpop.xlane.xlu0 %644
    %646 = vadd.xlane.f32.xlu0 %v521
    %v647 = vpop.xlane.xlu0 %646
    %648 = vadd.xlane.f32.xlu0 %v522
    %v649 = vpop.xlane.xlu0 %648
    %650 = vadd.xlane.f32.xlu0 %v523
    %v651 = vpop.xlane.xlu0 %650
    %652 = vadd.xlane.f32.xlu0 %v524
    %v653 = vpop.xlane.xlu0 %652
    %v654 = vadd.f32 %v606, %v623
    %v655 = vadd.f32 %v607, %v625
    %v656 = vadd.f32 %v608, %v627
    %v657 = vadd.f32 %v609, %v629
    %v658 = vadd.f32 %v610, %v631
    %v659 = vadd.f32 %v611, %v633
    %v660 = vadd.f32 %v612, %v635
    %v661 = vadd.f32 %v613, %v637
    %v662 = vadd.f32 %v614, %v639
    %v663 = vadd.f32 %v615, %v641
    %v664 = vadd.f32 %v616, %v643
    %v665 = vadd.f32 %v617, %v645
    %v666 = vadd.f32 %v618, %v647
    %v667 = vadd.f32 %v619, %v649
    %v668 = vadd.f32 %v620, %v651
    %v669 = vadd.f32 %v621, %v653
    %670 = vst.msk [vmem:[#allocation3] sm:$0xff] %vm589, %v654
    %671 = vst.msk [vmem:[#allocation3 + $0x8] sm:$0xff] %vm589, %v655
    %672 = vst.msk [vmem:[#allocation3 + $0x10] sm:$0xff] %vm589, %v656
    %673 = vst.msk [vmem:[#allocation3 + $0x18] sm:$0xff] %vm589, %v657
    %674 = vst.msk [vmem:[#allocation3 + $0x20] sm:$0xff] %vm589, %v658
    %675 = vst.msk [vmem:[#allocation3 + $0x28] sm:$0xff] %vm589, %v659
    %676 = vst.msk [vmem:[#allocation3 + $0x30] sm:$0xff] %vm589, %v660
    %677 = vst.msk [vmem:[#allocation3 + $0x38] sm:$0xff] %vm589, %v661
    %678 = vst.msk [vmem:[#allocation3 + $0x40] sm:$0xff] %vm589, %v662
    %679 = vst.msk [vmem:[#allocation3 + $0x48] sm:$0xff] %vm589, %v663
    %680 = vst.msk [vmem:[#allocation3 + $0x50] sm:$0xff] %vm589, %v664
    %681 = vst.msk [vmem:[#allocation3 + $0x58] sm:$0xff] %vm589, %v665
    %682 = vst.msk [vmem:[#allocation3 + $0x60] sm:$0xff] %vm589, %v666
    %683 = vst.msk [vmem:[#allocation3 + $0x68] sm:$0xff] %vm589, %v667
    %684 = vst.msk [vmem:[#allocation3 + $0x70] sm:$0xff] %vm589, %v668
    %685 = vst.msk [vmem:[#allocation3 + $0x78] sm:$0xff] %vm589, %v669
  $region29: #{tpu_custom_call.1} parent=0 // pred_fallthru
    _
  %p686 = scmp.ne.s32.totalorder 0, 0
  // Predicated region
  $region30: #{tpu_custom_call.1} parent=0 // pred_check
    %p687 = pneg %p686
  $region31: #{tpu_custom_call.1} parent=0 // pred_check_branch
    %689 = sbr.rel (%p687) target = $region33
  $region32: #{tpu_custom_call.1} parent=0 // pred_region
    %v690 = vmul.f32 %v259, 1.442695
    %v691 = vpow.pop %v690
    %v692 = vmul.f32 %v262, 1.442695
    %v693 = vpow.pop %v692
    %v694 = vmul.f32 %v267, 1.442695
    %v695 = vpow.pop %v694
    %v696 = vmul.f32 %v270, 1.442695
    %v697 = vpow.pop %v696
    %v698 = vmul.f32 %v275, 1.442695
    %v699 = vpow.pop %v698
    %v700 = vmul.f32 %v278, 1.442695
    %v701 = vpow.pop %v700
    %v702 = vmul.f32 %v283, 1.442695
    %v703 = vpow.pop %v702
    %v704 = vmul.f32 %v286, 1.442695
    %v705 = vpow.pop %v704
    %v706 = vmul.f32 %v291, 1.442695
    %v707 = vpow.pop %v706
    %v708 = vmul.f32 %v294, 1.442695
    %v709 = vpow.pop %v708
    %v710 = vmul.f32 %v299, 1.442695
    %v711 = vpow.pop %v710
    %v712 = vmul.f32 %v302, 1.442695
    %v713 = vpow.pop %v712
    %v714 = vmul.f32 %v307, 1.442695
    %v715 = vpow.pop %v714
    %v716 = vmul.f32 %v310, 1.442695
    %v717 = vpow.pop %v716
    %v718 = vmul.f32 %v315, 1.442695
    %v719 = vpow.pop %v718
    %v720 = vmul.f32 %v318, 1.442695
    %v721 = vpow.pop %v720
    %v722 = vsel %vm390, %v259, 0.0
    %v723 = vsel %vm391, %v262, 0.0
    %v724 = vsel %vm392, %v267, 0.0
    %v725 = vsel %vm393, %v270, 0.0
    %v726 = vsel %vm394, %v275, 0.0
    %v727 = vsel %vm395, %v278, 0.0
    %v728 = vsel %vm396, %v283, 0.0
    %v729 = vsel %vm397, %v286, 0.0
    %v730 = vsel %vm398, %v291, 0.0
    %v731 = vsel %vm399, %v294, 0.0
    %v732 = vsel %vm400, %v299, 0.0
    %v733 = vsel %vm401, %v302, 0.0
    %v734 = vsel %vm402, %v307, 0.0
    %v735 = vsel %vm403, %v310, 0.0
    %v736 = vsel %vm404, %v315, 0.0
    %v737 = vsel %vm405, %v318, 0.0
    %v738 = vld [vmem:[#allocation2] sm:$0xff]
    %v739 = vld [vmem:[#allocation2 + $0x8] sm:$0xff]
    %v740 = vld [vmem:[#allocation2 + $0x10] sm:$0xff]
    %v741 = vld [vmem:[#allocation2 + $0x18] sm:$0xff]
    %v742 = vld [vmem:[#allocation2 + $0x20] sm:$0xff]
    %v743 = vld [vmem:[#allocation2 + $0x28] sm:$0xff]
    %v744 = vld [vmem:[#allocation2 + $0x30] sm:$0xff]
    %v745 = vld [vmem:[#allocation2 + $0x38] sm:$0xff]
    %v746 = vld [vmem:[#allocation2 + $0x40] sm:$0xff]
    %v747 = vld [vmem:[#allocation2 + $0x48] sm:$0xff]
    %v748 = vld [vmem:[#allocation2 + $0x50] sm:$0xff]
    %v749 = vld [vmem:[#allocation2 + $0x58] sm:$0xff]
    %v750 = vld [vmem:[#allocation2 + $0x60] sm:$0xff]
    %v751 = vld [vmem:[#allocation2 + $0x68] sm:$0xff]
    %v752 = vld [vmem:[#allocation2 + $0x70] sm:$0xff]
    %v753 = vld [vmem:[#allocation2 + $0x78] sm:$0xff]
    %754 = vadd.xlane.f32.xlu0 %v691
    %v755 = vpop.xlane.xlu0 %754
    %756 = vadd.xlane.f32.xlu0 %v693
    %v757 = vpop.xlane.xlu0 %756
    %758 = vadd.xlane.f32.xlu0 %v695
    %v759 = vpop.xlane.xlu0 %758
    %760 = vadd.xlane.f32.xlu0 %v697
    %v761 = vpop.xlane.xlu0 %760
    %762 = vadd.xlane.f32.xlu0 %v699
    %v763 = vpop.xlane.xlu0 %762
    %764 = vadd.xlane.f32.xlu0 %v701
    %v765 = vpop.xlane.xlu0 %764
    %766 = vadd.xlane.f32.xlu0 %v703
    %v767 = vpop.xlane.xlu0 %766
    %768 = vadd.xlane.f32.xlu0 %v705
    %v769 = vpop.xlane.xlu0 %768
    %770 = vadd.xlane.f32.xlu0 %v707
    %v771 = vpop.xlane.xlu0 %770
    %772 = vadd.xlane.f32.xlu0 %v709
    %v773 = vpop.xlane.xlu0 %772
    %774 = vadd.xlane.f32.xlu0 %v711
    %v775 = vpop.xlane.xlu0 %774
    %776 = vadd.xlane.f32.xlu0 %v713
    %v777 = vpop.xlane.xlu0 %776
    %778 = vadd.xlane.f32.xlu0 %v715
    %v779 = vpop.xlane.xlu0 %778
    %780 = vadd.xlane.f32.xlu0 %v717
    %v781 = vpop.xlane.xlu0 %780
    %782 = vadd.xlane.f32.xlu0 %v719
    %v783 = vpop.xlane.xlu0 %782
    %784 = vadd.xlane.f32.xlu0 %v721
    %v785 = vpop.xlane.xlu0 %784
    %v786 = vadd.f32 %v738, %v755
    %v787 = vadd.f32 %v739, %v757
    %v788 = vadd.f32 %v740, %v759
    %v789 = vadd.f32 %v741, %v761
    %v790 = vadd.f32 %v742, %v763
    %v791 = vadd.f32 %v743, %v765
    %v792 = vadd.f32 %v744, %v767
    %v793 = vadd.f32 %v745, %v769
    %v794 = vadd.f32 %v746, %v771
    %v795 = vadd.f32 %v747, %v773
    %v796 = vadd.f32 %v748, %v775
    %v797 = vadd.f32 %v749, %v777
    %v798 = vadd.f32 %v750, %v779
    %v799 = vadd.f32 %v751, %v781
    %v800 = vadd.f32 %v752, %v783
    %v801 = vadd.f32 %v753, %v785
    %vm802 = vcmask 7168
    %803 = vst.msk [vmem:[#allocation2] sm:$0xff] %vm802, %v786
    %804 = vst.msk [vmem:[#allocation2 + $0x8] sm:$0xff] %vm802, %v787
    %805 = vst.msk [vmem:[#allocation2 + $0x10] sm:$0xff] %vm802, %v788
    %806 = vst.msk [vmem:[#allocation2 + $0x18] sm:$0xff] %vm802, %v789
    %807 = vst.msk [vmem:[#allocation2 + $0x20] sm:$0xff] %vm802, %v790
    %808 = vst.msk [vmem:[#allocation2 + $0x28] sm:$0xff] %vm802, %v791
    %809 = vst.msk [vmem:[#allocation2 + $0x30] sm:$0xff] %vm802, %v792
    %810 = vst.msk [vmem:[#allocation2 + $0x38] sm:$0xff] %vm802, %v793
    %811 = vst.msk [vmem:[#allocation2 + $0x40] sm:$0xff] %vm802, %v794
    %812 = vst.msk [vmem:[#allocation2 + $0x48] sm:$0xff] %vm802, %v795
    %813 = vst.msk [vmem:[#allocation2 + $0x50] sm:$0xff] %vm802, %v796
    %814 = vst.msk [vmem:[#allocation2 + $0x58] sm:$0xff] %vm802, %v797
    %815 = vst.msk [vmem:[#allocation2 + $0x60] sm:$0xff] %vm802, %v798
    %816 = vst.msk [vmem:[#allocation2 + $0x68] sm:$0xff] %vm802, %v799
    %817 = vst.msk [vmem:[#allocation2 + $0x70] sm:$0xff] %vm802, %v800
    %818 = vst.msk [vmem:[#allocation2 + $0x78] sm:$0xff] %vm802, %v801
    %v819 = vld [vmem:[#allocation3] sm:$0xff]
    %v820 = vld [vmem:[#allocation3 + $0x8] sm:$0xff]
    %v821 = vld [vmem:[#allocation3 + $0x10] sm:$0xff]
    %v822 = vld [vmem:[#allocation3 + $0x18] sm:$0xff]
    %v823 = vld [vmem:[#allocation3 + $0x20] sm:$0xff]
    %v824 = vld [vmem:[#allocation3 + $0x28] sm:$0xff]
    %v825 = vld [vmem:[#allocation3 + $0x30] sm:$0xff]
    %v826 = vld [vmem:[#allocation3 + $0x38] sm:$0xff]
    %v827 = vld [vmem:[#allocation3 + $0x40] sm:$0xff]
    %v828 = vld [vmem:[#allocation3 + $0x48] sm:$0xff]
    %v829 = vld [vmem:[#allocation3 + $0x50] sm:$0xff]
    %v830 = vld [vmem:[#allocation3 + $0x58] sm:$0xff]
    %v831 = vld [vmem:[#allocation3 + $0x60] sm:$0xff]
    %v832 = vld [vmem:[#allocation3 + $0x68] sm:$0xff]
    %v833 = vld [vmem:[#allocation3 + $0x70] sm:$0xff]
    %v834 = vld [vmem:[#allocation3 + $0x78] sm:$0xff]
    %835 = vadd.xlane.f32.xlu0 %v722
    %v836 = vpop.xlane.xlu0 %835
    %837 = vadd.xlane.f32.xlu0 %v723
    %v838 = vpop.xlane.xlu0 %837
    %839 = vadd.xlane.f32.xlu0 %v724
    %v840 = vpop.xlane.xlu0 %839
    %841 = vadd.xlane.f32.xlu0 %v725
    %v842 = vpop.xlane.xlu0 %841
    %843 = vadd.xlane.f32.xlu0 %v726
    %v844 = vpop.xlane.xlu0 %843
    %845 = vadd.xlane.f32.xlu0 %v727
    %v846 = vpop.xlane.xlu0 %845
    %847 = vadd.xlane.f32.xlu0 %v728
    %v848 = vpop.xlane.xlu0 %847
    %849 = vadd.xlane.f32.xlu0 %v729
    %v850 = vpop.xlane.xlu0 %849
    %851 = vadd.xlane.f32.xlu0 %v730
    %v852 = vpop.xlane.xlu0 %851
    %853 = vadd.xlane.f32.xlu0 %v731
    %v854 = vpop.xlane.xlu0 %853
    %855 = vadd.xlane.f32.xlu0 %v732
    %v856 = vpop.xlane.xlu0 %855
    %857 = vadd.xlane.f32.xlu0 %v733
    %v858 = vpop.xlane.xlu0 %857
    %859 = vadd.xlane.f32.xlu0 %v734
    %v860 = vpop.xlane.xlu0 %859
    %861 = vadd.xlane.f32.xlu0 %v735
    %v862 = vpop.xlane.xlu0 %861
    %863 = vadd.xlane.f32.xlu0 %v736
    %v864 = vpop.xlane.xlu0 %863
    %865 = vadd.xlane.f32.xlu0 %v737
    %v866 = vpop.xlane.xlu0 %865
    %v867 = vadd.f32 %v819, %v836
    %v868 = vadd.f32 %v820, %v838
    %v869 = vadd.f32 %v821, %v840
    %v870 = vadd.f32 %v822, %v842
    %v871 = vadd.f32 %v823, %v844
    %v872 = vadd.f32 %v824, %v846
    %v873 = vadd.f32 %v825, %v848
    %v874 = vadd.f32 %v826, %v850
    %v875 = vadd.f32 %v827, %v852
    %v876 = vadd.f32 %v828, %v854
    %v877 = vadd.f32 %v829, %v856
    %v878 = vadd.f32 %v830, %v858
    %v879 = vadd.f32 %v831, %v860
    %v880 = vadd.f32 %v832, %v862
    %v881 = vadd.f32 %v833, %v864
    %v882 = vadd.f32 %v834, %v866
    %883 = vst.msk [vmem:[#allocation3] sm:$0xff] %vm802, %v867
    %884 = vst.msk [vmem:[#allocation3 + $0x8] sm:$0xff] %vm802, %v868
    %885 = vst.msk [vmem:[#allocation3 + $0x10] sm:$0xff] %vm802, %v869
    %886 = vst.msk [vmem:[#allocation3 + $0x18] sm:$0xff] %vm802, %v870
    %887 = vst.msk [vmem:[#allocation3 + $0x20] sm:$0xff] %vm802, %v871
    %888 = vst.msk [vmem:[#allocation3 + $0x28] sm:$0xff] %vm802, %v872
    %889 = vst.msk [vmem:[#allocation3 + $0x30] sm:$0xff] %vm802, %v873
    %890 = vst.msk [vmem:[#allocation3 + $0x38] sm:$0xff] %vm802, %v874
    %891 = vst.msk [vmem:[#allocation3 + $0x40] sm:$0xff] %vm802, %v875
    %892 = vst.msk [vmem:[#allocation3 + $0x48] sm:$0xff] %vm802, %v876
    %893 = vst.msk [vmem:[#allocation3 + $0x50] sm:$0xff] %vm802, %v877
    %894 = vst.msk [vmem:[#allocation3 + $0x58] sm:$0xff] %vm802, %v878
    %895 = vst.msk [vmem:[#allocation3 + $0x60] sm:$0xff] %vm802, %v879
    %896 = vst.msk [vmem:[#allocation3 + $0x68] sm:$0xff] %vm802, %v880
    %897 = vst.msk [vmem:[#allocation3 + $0x70] sm:$0xff] %vm802, %v881
    %898 = vst.msk [vmem:[#allocation3 + $0x78] sm:$0xff] %vm802, %v882
  $region33: #{tpu_custom_call.1} parent=0 // pred_fallthru
    _
  // Predicated region
  $region34: #{tpu_custom_call.1} parent=0 // pred_check
    %p899 = pneg %p21
  $region35: #{tpu_custom_call.1} parent=0 // pred_check_branch
    %901 = sbr.rel (%p899) target = $region37
  $region36: #{tpu_custom_call.1} parent=0 // pred_region
    %v902 = vld [vmem:[%s0] sm:$0xff]
    %v903 = vld [vmem:[%s0 + $0x8] sm:$0xff]
    %v904 = vld [vmem:[%s0 + $0x10] sm:$0xff]
    %v905 = vld [vmem:[%s0 + $0x18] sm:$0xff]
    %v906 = vld [vmem:[%s0 + $0x20] sm:$0xff]
    %v907 = vld [vmem:[%s0 + $0x28] sm:$0xff]
    %v908 = vld [vmem:[%s0 + $0x30] sm:$0xff]
    %v909 = vld [vmem:[%s0 + $0x38] sm:$0xff]
    %v910 = vld [vmem:[%s0 + $0x40] sm:$0xff]
    %v911 = vld [vmem:[%s0 + $0x48] sm:$0xff]
    %v912 = vld [vmem:[%s0 + $0x50] sm:$0xff]
    %v913 = vld [vmem:[%s0 + $0x58] sm:$0xff]
    %v914 = vld [vmem:[%s0 + $0x60] sm:$0xff]
    %v915 = vld [vmem:[%s0 + $0x68] sm:$0xff]
    %v916 = vld [vmem:[%s0 + $0x70] sm:$0xff]
    %v917 = vld [vmem:[%s0 + $0x78] sm:$0xff]
    %v918 = vld [vmem:[#allocation2] sm:$0xff]
    %v919 = vld [vmem:[#allocation2 + $0x8] sm:$0xff]
    %v920 = vld [vmem:[#allocation2 + $0x10] sm:$0xff]
    %v921 = vld [vmem:[#allocation2 + $0x18] sm:$0xff]
    %v922 = vld [vmem:[#allocation2 + $0x20] sm:$0xff]
    %v923 = vld [vmem:[#allocation2 + $0x28] sm:$0xff]
    %v924 = vld [vmem:[#allocation2 + $0x30] sm:$0xff]
    %v925 = vld [vmem:[#allocation2 + $0x38] sm:$0xff]
    %v926 = vld [vmem:[#allocation2 + $0x40] sm:$0xff]
    %v927 = vld [vmem:[#allocation2 + $0x48] sm:$0xff]
    %v928 = vld [vmem:[#allocation2 + $0x50] sm:$0xff]
    %v929 = vld [vmem:[#allocation2 + $0x58] sm:$0xff]
    %v930 = vld [vmem:[#allocation2 + $0x60] sm:$0xff]
    %v931 = vld [vmem:[#allocation2 + $0x68] sm:$0xff]
    %v932 = vld [vmem:[#allocation2 + $0x70] sm:$0xff]
    %v933 = vld [vmem:[#allocation2 + $0x78] sm:$0xff]
    %v934 = vsub.f32 %v918, 120.0
    %v935 = vsub.f32 %v919, 120.0
    %v936 = vsub.f32 %v920, 120.0
    %v937 = vsub.f32 %v921, 120.0
    %v938 = vsub.f32 %v922, 120.0
    %v939 = vsub.f32 %v923, 120.0
    %v940 = vsub.f32 %v924, 120.0
    %v941 = vsub.f32 %v925, 120.0
    %v942 = vsub.f32 %v926, 120.0
    %v943 = vsub.f32 %v927, 120.0
    %v944 = vsub.f32 %v928, 120.0
    %v945 = vsub.f32 %v929, 120.0
    %v946 = vsub.f32 %v930, 120.0
    %v947 = vsub.f32 %v931, 120.0
    %v948 = vsub.f32 %v932, 120.0
    %v949 = vsub.f32 %v933, 120.0
    %v950 = vld [vmem:[#allocation3] sm:$0xff]
    %v951 = vld [vmem:[#allocation3 + $0x8] sm:$0xff]
    %v952 = vld [vmem:[#allocation3 + $0x10] sm:$0xff]
    %v953 = vld [vmem:[#allocation3 + $0x18] sm:$0xff]
    %v954 = vld [vmem:[#allocation3 + $0x20] sm:$0xff]
    %v955 = vld [vmem:[#allocation3 + $0x28] sm:$0xff]
    %v956 = vld [vmem:[#allocation3 + $0x30] sm:$0xff]
    %v957 = vld [vmem:[#allocation3 + $0x38] sm:$0xff]
    %v958 = vld [vmem:[#allocation3 + $0x40] sm:$0xff]
    %v959 = vld [vmem:[#allocation3 + $0x48] sm:$0xff]
    %v960 = vld [vmem:[#allocation3 + $0x50] sm:$0xff]
    %v961 = vld [vmem:[#allocation3 + $0x58] sm:$0xff]
    %v962 = vld [vmem:[#allocation3 + $0x60] sm:$0xff]
    %v963 = vld [vmem:[#allocation3 + $0x68] sm:$0xff]
    %v964 = vld [vmem:[#allocation3 + $0x70] sm:$0xff]
    %v965 = vld [vmem:[#allocation3 + $0x78] sm:$0xff]
    %v966 = vadd.f32 %v934, 1e-08
    %v967 = vadd.f32 %v935, 1e-08
    %v968 = vadd.f32 %v936, 1e-08
    %v969 = vadd.f32 %v937, 1e-08
    %v970 = vadd.f32 %v938, 1e-08
    %v971 = vadd.f32 %v939, 1e-08
    %v972 = vadd.f32 %v940, 1e-08
    %v973 = vadd.f32 %v941, 1e-08
    %v974 = vadd.f32 %v942, 1e-08
    %v975 = vadd.f32 %v943, 1e-08
    %v976 = vadd.f32 %v944, 1e-08
    %v977 = vadd.f32 %v945, 1e-08
    %v978 = vadd.f32 %v946, 1e-08
    %v979 = vadd.f32 %v947, 1e-08
    %v980 = vadd.f32 %v948, 1e-08
    %v981 = vadd.f32 %v949, 1e-08
    %v982 = vlog2.pop %v966
    %v983 = vmul.f32 %v982, 0.6931472
    %v984 = vlog2.pop %v967
    %v985 = vmul.f32 %v984, 0.6931472
    %v986 = vlog2.pop %v968
    %v987 = vmul.f32 %v986, 0.6931472
    %v988 = vlog2.pop %v969
    %v989 = vmul.f32 %v988, 0.6931472
    %v990 = vlog2.pop %v970
    %v991 = vmul.f32 %v990, 0.6931472
    %v992 = vlog2.pop %v971
    %v993 = vmul.f32 %v992, 0.6931472
    %v994 = vlog2.pop %v972
    %v995 = vmul.f32 %v994, 0.6931472
    %v996 = vlog2.pop %v973
    %v997 = vmul.f32 %v996, 0.6931472
    %v998 = vlog2.pop %v974
    %v999 = vmul.f32 %v998, 0.6931472
    %v1000 = vlog2.pop %v975
    %v1001 = vmul.f32 %v1000, 0.6931472
    %v1002 = vlog2.pop %v976
    %v1003 = vmul.f32 %v1002, 0.6931472
    %v1004 = vlog2.pop %v977
    %v1005 = vmul.f32 %v1004, 0.6931472
    %v1006 = vlog2.pop %v978
    %v1007 = vmul.f32 %v1006, 0.6931472
    %v1008 = vlog2.pop %v979
    %v1009 = vmul.f32 %v1008, 0.6931472
    %v1010 = vlog2.pop %v980
    %v1011 = vmul.f32 %v1010, 0.6931472
    %v1012 = vlog2.pop %v981
    %v1013 = vmul.f32 %v1012, 0.6931472
    %v1014 = vmul.f32 %v902, %v983
    %v1015 = vmul.f32 %v903, %v985
    %v1016 = vmul.f32 %v904, %v987
    %v1017 = vmul.f32 %v905, %v989
    %v1018 = vmul.f32 %v906, %v991
    %v1019 = vmul.f32 %v907, %v993
    %v1020 = vmul.f32 %v908, %v995
    %v1021 = vmul.f32 %v909, %v997
    %v1022 = vmul.f32 %v910, %v999
    %v1023 = vmul.f32 %v911, %v1001
    %v1024 = vmul.f32 %v912, %v1003
    %v1025 = vmul.f32 %v913, %v1005
    %v1026 = vmul.f32 %v914, %v1007
    %v1027 = vmul.f32 %v915, %v1009
    %v1028 = vmul.f32 %v916, %v1011
    %v1029 = vmul.f32 %v917, %v1013
    %v1030 = vsub.f32 %v950, %v1014
    %v1031 = vsub.f32 %v951, %v1015
    %v1032 = vsub.f32 %v952, %v1016
    %v1033 = vsub.f32 %v953, %v1017
    %v1034 = vsub.f32 %v954, %v1018
    %v1035 = vsub.f32 %v955, %v1019
    %v1036 = vsub.f32 %v956, %v1020
    %v1037 = vsub.f32 %v957, %v1021
    %v1038 = vsub.f32 %v958, %v1022
    %v1039 = vsub.f32 %v959, %v1023
    %v1040 = vsub.f32 %v960, %v1024
    %v1041 = vsub.f32 %v961, %v1025
    %v1042 = vsub.f32 %v962, %v1026
    %v1043 = vsub.f32 %v963, %v1027
    %v1044 = vsub.f32 %v964, %v1028
    %v1045 = vsub.f32 %v965, %v1029
    %v1046 = vadd.f32 %v902, 1e-08
    %v1047 = vadd.f32 %v903, 1e-08
    %v1048 = vadd.f32 %v904, 1e-08
    %v1049 = vadd.f32 %v905, 1e-08
    %v1050 = vadd.f32 %v906, 1e-08
    %v1051 = vadd.f32 %v907, 1e-08
    %v1052 = vadd.f32 %v908, 1e-08
    %v1053 = vadd.f32 %v909, 1e-08
    %v1054 = vadd.f32 %v910, 1e-08
    %v1055 = vadd.f32 %v911, 1e-08
    %v1056 = vadd.f32 %v912, 1e-08
    %v1057 = vadd.f32 %v913, 1e-08
    %v1058 = vadd.f32 %v914, 1e-08
    %v1059 = vadd.f32 %v915, 1e-08
    %v1060 = vadd.f32 %v916, 1e-08
    %v1061 = vadd.f32 %v917, 1e-08
    %v1062 = vrcp.pop %v1046
    %v1063 = vmul.f32 %v1030, %v1062
    %v1064 = vrcp.pop %v1047
    %v1065 = vmul.f32 %v1031, %v1064
    %v1066 = vrcp.pop %v1048
    %v1067 = vmul.f32 %v1032, %v1066
    %v1068 = vrcp.pop %v1049
    %v1069 = vmul.f32 %v1033, %v1068
    %v1070 = vrcp.pop %v1050
    %v1071 = vmul.f32 %v1034, %v1070
    %v1072 = vrcp.pop %v1051
    %v1073 = vmul.f32 %v1035, %v1072
    %v1074 = vrcp.pop %v1052
    %v1075 = vmul.f32 %v1036, %v1074
    %v1076 = vrcp.pop %v1053
    %v1077 = vmul.f32 %v1037, %v1076
    %v1078 = vrcp.pop %v1054
    %v1079 = vmul.f32 %v1038, %v1078
    %v1080 = vrcp.pop %v1055
    %v1081 = vmul.f32 %v1039, %v1080
    %v1082 = vrcp.pop %v1056
    %v1083 = vmul.f32 %v1040, %v1082
    %v1084 = vrcp.pop %v1057
    %v1085 = vmul.f32 %v1041, %v1084
    %v1086 = vrcp.pop %v1058
    %v1087 = vmul.f32 %v1042, %v1086
    %v1088 = vrcp.pop %v1059
    %v1089 = vmul.f32 %v1043, %v1088
    %v1090 = vrcp.pop %v1060
    %v1091 = vmul.f32 %v1044, %v1090
    %v1092 = vrcp.pop %v1061
    %v1093 = vmul.f32 %v1045, %v1092
    %vm1094 = vcmask 7168
    %1095 = vst.msk [vmem:[%s5] sm:$0xff] %vm1094, %v1063
    %1096 = vst.msk [vmem:[%s5 + $0x8] sm:$0xff] %vm1094, %v1065
    %1097 = vst.msk [vmem:[%s5 + $0x10] sm:$0xff] %vm1094, %v1067
    %1098 = vst.msk [vmem:[%s5 + $0x18] sm:$0xff] %vm1094, %v1069
    %1099 = vst.msk [vmem:[%s5 + $0x20] sm:$0xff] %vm1094, %v1071
    %1100 = vst.msk [vmem:[%s5 + $0x28] sm:$0xff] %vm1094, %v1073
    %1101 = vst.msk [vmem:[%s5 + $0x30] sm:$0xff] %vm1094, %v1075
    %1102 = vst.msk [vmem:[%s5 + $0x38] sm:$0xff] %vm1094, %v1077
    %1103 = vst.msk [vmem:[%s5 + $0x40] sm:$0xff] %vm1094, %v1079
    %1104 = vst.msk [vmem:[%s5 + $0x48] sm:$0xff] %vm1094, %v1081
    %1105 = vst.msk [vmem:[%s5 + $0x50] sm:$0xff] %vm1094, %v1083
    %1106 = vst.msk [vmem:[%s5 + $0x58] sm:$0xff] %vm1094, %v1085
    %1107 = vst.msk [vmem:[%s5 + $0x60] sm:$0xff] %vm1094, %v1087
    %1108 = vst.msk [vmem:[%s5 + $0x68] sm:$0xff] %vm1094, %v1089
    %1109 = vst.msk [vmem:[%s5 + $0x70] sm:$0xff] %vm1094, %v1091
    %1110 = vst.msk [vmem:[%s5 + $0x78] sm:$0xff] %vm1094, %v1093
  $region37: #{tpu_custom_call.1} parent=0 // pred_fallthru
    _
  // Predicated region
  $region38: #{tpu_custom_call.1} parent=0 // pred_check
    _
  $region39: #{tpu_custom_call.1} parent=0 // pred_check_branch
    %1112 = sbr.rel (0) target = $region41
  $region40: #{tpu_custom_call.1} parent=0 // pred_region
    _
  $region41: #{tpu_custom_call.1} parent=0 // pred_fallthru
    _
  // Predicated region
  $region42: #{tpu_custom_call.1} parent=0 // pred_check
    _
  $region43: #{tpu_custom_call.1} parent=0 // pred_check_branch
    %1114 = sbr.rel (0) target = $region45
  $region44: #{tpu_custom_call.1} parent=0 // pred_region
    _
  $region45: #{tpu_custom_call.1} parent=0 // pred_fallthru
    _

</llo_original>
